<compile_context>
chip_gen: v6e
topology: v6e:2x2x1
jax: 0.10.0
libtpu: 0.0.40
codegen_flags: <defaults>
</compile_context>

<pallas_src>
import functools

import jax
import jax.numpy as jnp
from jax.experimental import pallas as pl
from jax.experimental.pallas import tpu as pltpu

_LANE = 128
_SUBLANE = 8
_NUM_CORE_SPLITS = 2                         # leading "parallel" axis (v7x has 2 TCs)
_VMEM_LIMIT_BYTES = 32 * 1024 * 1024         # scoped VMEM limit (safe on v5e/v6e/v7x)
_TILE_PAIR_BUDGET_BYTES = 16 * 1024 * 1024   # 2 inputs x 2 pipeline buffers


def _round_up(x, m):
    return ((x + m - 1) // m) * m


def _pick_tile_rows(rows_per_split, d_pad, itemsize):
    """Largest batch tile s.t. 2 inputs x 2 pipeline buffers fit the VMEM budget."""
    tb = _TILE_PAIR_BUDGET_BYTES // (4 * d_pad * itemsize)
    tb = min(tb, 4096, _round_up(rows_per_split, _SUBLANE))
    return max(_SUBLANE, (tb // _SUBLANE) * _SUBLANE)


def _contrastive_loss_kernel(mask_ref, x_ref, y_ref, out_ref, *, margin, scale):
    """One (TB, Dp) batch tile -> partial contrastive-loss sum.

    mask_ref : (TB, 1)   f32  1.0 where label1 == label2 else 0.0
    x_ref    : (TB, Dp)       conv_out1 tile (Dp = D padded to a lane multiple)
    y_ref    : (TB, Dp)       conv_out2 tile
    out_ref  : (1, 1, 1) f32  per-core-split partial, accumulated across the
                              inner ("arbitrary") grid axis.
    """
    @pl.when(pl.program_id(1) == 0)
    def _init():
        out_ref[...] = jnp.zeros_like(out_ref)

    x = x_ref[...].astype(jnp.float32)
    y = y_ref[...].astype(jnp.float32)
    z = x - y
    dist_sq = jnp.sum(z * z, axis=1, keepdims=True)      # (TB, 1) lane reduce (XLU)
    diff = jnp.sqrt(dist_sq)                              # exactly one EUP op per row
    y_cont = mask_ref[...]                                # (TB, 1)
    hinge = jnp.maximum(jnp.float32(margin) - diff, 0.0)
    # 0.5 and 1/B are folded into `scale`.  Padded rows carry mask==1 and
    # dist_sq==0, hence contribute exactly 0.
    loss = y_cont * dist_sq + (1.0 - y_cont) * (hinge * hinge)
    out_ref[...] += jnp.float32(scale) * jnp.sum(loss)


def contrastive_loss(label1, label2, conv_out1, conv_out2, *, margin=1.0):
    """label1/label2: (B,) label ids.  conv_out1/conv_out2: (B, D).  Returns f32 scalar."""
    B, D = conv_out1.shape
    nc = _NUM_CORE_SPLITS

    # Equal-label mask computed once in the wrapper (exact compare on the
    # original label dtype, e.g. int32) — avoids shipping two lane-sparse
    # label columns into VMEM and the in-kernel compare/cast.
    y_cont = (label1.reshape(-1) == label2.reshape(-1)).astype(jnp.float32)

    # Lane-dense feature axis: zero-pad D to a multiple of 128 (does not change
    # the squared distance).  No-op when D is already lane-aligned.
    d_pad = _round_up(D, _LANE)

    itemsize = jnp.dtype(conv_out1.dtype).itemsize
    tb = _pick_tile_rows(pl.cdiv(B, nc), d_pad, itemsize)
    b_pad = _round_up(B, nc * tb)
    steps = b_pad // (nc * tb)

    # Padded rows: zero features + mask==1  ->  per-row loss contribution 0.
    conv1 = jnp.pad(conv_out1, ((0, b_pad - B), (0, d_pad - D)))
    conv2 = jnp.pad(conv_out2, ((0, b_pad - B), (0, d_pad - D)))
    mask = jnp.pad(y_cont, (0, b_pad - B), constant_values=1.0).reshape(b_pad, 1)

    kernel = functools.partial(
        _contrastive_loss_kernel, margin=float(margin), scale=0.5 / B)

    def row_map(c, i):
        return (c * steps + i, 0)

    partials = pl.pallas_call(
        kernel,
        out_shape=jax.ShapeDtypeStruct((nc, 1, 1), jnp.float32),
        grid=(nc, steps),
        in_specs=[
            pl.BlockSpec((tb, 1), row_map),        # equal-label mask
            pl.BlockSpec((tb, d_pad), row_map),    # conv_out1
            pl.BlockSpec((tb, d_pad), row_map),    # conv_out2
        ],
        out_specs=pl.BlockSpec((1, 1, 1), lambda c, i: (c, 0, 0)),
        compiler_params=pltpu.CompilerParams(
            dimension_semantics=("parallel", "arbitrary"),
            vmem_limit_bytes=_VMEM_LIMIT_BYTES,
        ),
    )(mask, conv1, conv2)

    # Sum the per-core-split partials (each already scaled by 0.5 / B).
    return jnp.sum(partials)


def _reference(label1, label2, conv_out1, conv_out2, margin=1.0):
    # Pure-JAX mirror of the PyTorch forward (1-D labels).
    z = conv_out1.astype(jnp.float32) - conv_out2.astype(jnp.float32)
    diff = jnp.sqrt(jnp.sum(z * z, axis=1))
    dist_sq = diff * diff
    y_cont = (label1.reshape(-1) == label2.reshape(-1)).astype(jnp.float32)
    loss = 0.5 * y_cont * dist_sq + 0.5 * (1.0 - y_cont) * jnp.maximum(
        margin - diff, 0.0) ** 2
    return jnp.mean(loss)


if __name__ == "__main__":
    key = jax.random.PRNGKey(0)
    k1, k2, k3, k4 = jax.random.split(key, 4)

    B, D = 8, 32
    num_labels = 4
    margin = 1.0

    # Integer label ids, as produced upstream by ContrastiveLoss.label_map().
    label1 = jax.random.randint(k1, (B,), 0, num_labels, dtype=jnp.int32)
    label2 = jax.random.randint(k2, (B,), 0, num_labels, dtype=jnp.int32)
    conv_out1 = jax.random.normal(k3, (B, D), dtype=jnp.float32)
    conv_out2 = jax.random.normal(k4, (B, D), dtype=jnp.float32)

    out = contrastive_loss(label1, label2, conv_out1, conv_out2, margin=margin)
    out = jax.block_until_ready(out)

    ref = _reference(label1, label2, conv_out1, conv_out2, margin=margin)
    assert jnp.allclose(out, ref, rtol=1e-5, atol=1e-5), (out, ref)

    print("KERNEL_OK")
</pallas_src>

<mosaic_0001>
module attributes {stable_mosaic.version = 11 : i64} {
  func.func @_contrastive_loss_kernel(%arg0: i32, %arg1: i32, %arg2: memref<8x1xf32, #tpu.memory_space<vmem>>, %arg3: memref<8x128xf32, #tpu.memory_space<vmem>>, %arg4: memref<8x128xf32, #tpu.memory_space<vmem>>, %arg5: memref<1x1x1xf32, #tpu.memory_space<vmem>>) attributes {dimension_semantics = [#tpu.dimension_semantics<parallel>, #tpu.dimension_semantics<arbitrary>], iteration_bounds = array<i64: 2, 1>, scalar_prefetch = 0 : i64, scratch_operands = 0 : i64, tpu.core_type = #tpu.core_type<tc>, window_params = [{transform_indices = @transform_0, window_bounds = array<i64: 8, 1>}, {transform_indices = @transform_1, window_bounds = array<i64: 8, 128>}, {transform_indices = @transform_2, window_bounds = array<i64: 8, 128>}, {transform_indices = @transform_3, window_bounds = array<i64: 1, 1, 1>}]} {
    %c0_i32 = arith.constant 0 : i32
    %0 = arith.cmpi eq, %arg1, %c0_i32 : i32
    %1 = arith.extui %0 : i1 to i32
    %c0_i32_0 = arith.constant 0 : i32
    %2 = arith.cmpi ne, %1, %c0_i32_0 : i32
    scf.if %2 {
      %cst_17 = arith.constant 0.000000e+00 : f32
      %30 = vector.broadcast %cst_17 : f32 to vector<1x1x1xf32>
      %c0_18 = arith.constant 0 : index
      %c0_19 = arith.constant 0 : index
      %c0_20 = arith.constant 0 : index
      %31 = vector.load %arg5[%c0_18, %c0_19, %c0_20] : memref<1x1x1xf32, #tpu.memory_space<vmem>>, vector<1x1x1xf32>
      tpu.vector_store %arg5[%c0_18, %c0_19, %c0_20], %30 {strides = array<i32>} : memref<1x1x1xf32, #tpu.memory_space<vmem>>, vector<1x1x1xf32>,
    } else {
    }
    %c0 = arith.constant 0 : index
    %c0_1 = arith.constant 0 : index
    %3 = vector.load %arg3[%c0, %c0_1] : memref<8x128xf32, #tpu.memory_space<vmem>>, vector<8x128xf32>
    %c0_2 = arith.constant 0 : index
    %c0_3 = arith.constant 0 : index
    %4 = vector.load %arg4[%c0_2, %c0_3] : memref<8x128xf32, #tpu.memory_space<vmem>>, vector<8x128xf32>
    %5 = arith.subf %3, %4 : vector<8x128xf32>
    %6 = arith.mulf %5, %5 : vector<8x128xf32>
    %cst = arith.constant dense<0.000000e+00> : vector<8xf32>
    %7 = vector.multi_reduction <add>, %6, %cst [1] : vector<8x128xf32> to vector<8xf32>
    %8 = vector.shape_cast %7 : vector<8xf32> to vector<8x1xf32>
    %9 = math.sqrt %8 : vector<8x1xf32>
    %c0_4 = arith.constant 0 : index
    %c0_5 = arith.constant 0 : index
    %10 = vector.load %arg2[%c0_4, %c0_5] : memref<8x1xf32, #tpu.memory_space<vmem>>, vector<8x1xf32>
    %cst_6 = arith.constant 1.000000e+00 : f32
    %11 = vector.broadcast %cst_6 : f32 to vector<8x1xf32>
    %12 = arith.subf %11, %9 : vector<8x1xf32>
    %cst_7 = arith.constant 0.000000e+00 : f32
    %13 = vector.broadcast %cst_7 : f32 to vector<8x1xf32>
    %14 = arith.maximumf %12, %13 : vector<8x1xf32>
    %15 = arith.mulf %10, %8 : vector<8x1xf32>
    %cst_8 = arith.constant 1.000000e+00 : f32
    %16 = vector.broadcast %cst_8 : f32 to vector<8x1xf32>
    %17 = arith.subf %16, %10 : vector<8x1xf32>
    %18 = arith.mulf %14, %14 : vector<8x1xf32>
    %19 = arith.mulf %17, %18 : vector<8x1xf32>
    %20 = arith.addf %15, %19 : vector<8x1xf32>
    %c0_9 = arith.constant 0 : index
    %c0_10 = arith.constant 0 : index
    %c0_11 = arith.constant 0 : index
    %21 = vector.load %arg5[%c0_9, %c0_10, %c0_11] : memref<1x1x1xf32, #tpu.memory_space<vmem>>, vector<1x1x1xf32>
    %22 = vector.shape_cast %20 : vector<8x1xf32> to vector<1x8x1xf32>
    %cst_12 = arith.constant dense<0.000000e+00> : vector<1xf32>
    %23 = vector.multi_reduction <add>, %22, %cst_12 [1, 2] : vector<1x8x1xf32> to vector<1xf32>
    %24 = vector.shape_cast %23 : vector<1xf32> to vector<1x1x1xf32>
    %25 = vector.extract %24[0, 0, 0] : f32 from vector<1x1x1xf32>
    %cst_13 = arith.constant 6.250000e-02 : f32
    %26 = arith.mulf %cst_13, %25 : f32
    %27 = vector.broadcast %26 : f32 to vector<1x1x1xf32>
    %28 = arith.addf %21, %27 : vector<1x1x1xf32>
    %c0_14 = arith.constant 0 : index
    %c0_15 = arith.constant 0 : index
    %c0_16 = arith.constant 0 : index
    %29 = vector.load %arg5[%c0_14, %c0_15, %c0_16] : memref<1x1x1xf32, #tpu.memory_space<vmem>>, vector<1x1x1xf32>
    tpu.vector_store %arg5[%c0_14, %c0_15, %c0_16], %28 {strides = array<i32>} : memref<1x1x1xf32, #tpu.memory_space<vmem>>, vector<1x1x1xf32>,
    return
  }
  func.func @transform_0(%arg0: i32, %arg1: i32) -> (i32, i32) {
    %c1_i32 = arith.constant 1 : i32
    %0 = arith.muli %arg0, %c1_i32 : i32
    %1 = arith.addi %0, %arg1 : i32
    %c0_i32 = arith.constant 0 : i32
    %c0_i32_0 = arith.constant 0 : i32
    return %1, %c0_i32 : i32, i32
  }
  func.func @transform_1(%arg0: i32, %arg1: i32) -> (i32, i32) {
    %c1_i32 = arith.constant 1 : i32
    %0 = arith.muli %arg0, %c1_i32 : i32
    %1 = arith.addi %0, %arg1 : i32
    %c0_i32 = arith.constant 0 : i32
    %c0_i32_0 = arith.constant 0 : i32
    return %1, %c0_i32 : i32, i32
  }
  func.func @transform_2(%arg0: i32, %arg1: i32) -> (i32, i32) {
    %c1_i32 = arith.constant 1 : i32
    %0 = arith.muli %arg0, %c1_i32 : i32
    %1 = arith.addi %0, %arg1 : i32
    %c0_i32 = arith.constant 0 : i32
    %c0_i32_0 = arith.constant 0 : i32
    return %1, %c0_i32 : i32, i32
  }
  func.func @transform_3(%arg0: i32, %arg1: i32) -> (i32, i32, i32) {
    %c0_i32 = arith.constant 0 : i32
    %c0_i32_0 = arith.constant 0 : i32
    %c0_i32_1 = arith.constant 0 : i32
    return %arg0, %c0_i32, %c0_i32_0 : i32, i32, i32
  }
}

</mosaic_0001>

<llo_original>
// kernel: tpu_custom_call.1
$region0: #{tpu_custom_call.1}
  #allocation0 [shape = 'u32[]', space=smem, size = 0x4, offset = 0x4, fixed_abs, tag = 'smem constant byte address 0x4 - core index']
  #allocation1 [shape = 'u32[144,128]{1,0:T(1,128)}', space=vmem, size = 0x12000, scoped, tag = 'internal scratch']
  %s0 = inlined_call_operand.vmem [shape: f32[16,1], index: 0, kind: input, shape index: {}]
  %s1 = inlined_call_operand.vmem [shape: f32[16,128], index: 1, kind: input, shape index: {}]
  %s2 = inlined_call_operand.hbm [shape: f32[16,128], index: 2, kind: input, shape index: {}]
  %s3 = inlined_call_operand.vmem [shape: f32[2,1,1], index: 3, kind: output, shape index: {}]
  %s4 = sld [smem:[#allocation0]]
  $region53: #{tpu_custom_call.1} parent=0
    _
  %s6 = ssub.s32 1, %s4
  %s7 = scalar_select 0, %s6, %s4
  $region1: #{tpu_custom_call.1} parent=0
    #allocation2 [shape = 'u8[8192]{0}', space=vmem, size = 0x2000, scoped, tag = 'input window, operand 2']
    #allocation3 [shape = 's32[2]{0}', space=sflag, size = 0x8, scoped, tag = 'scoped memory for tpu_custom_call.1']
    %8 = vsyncpa [#allocation3], 0
    %s9 = scalar_lea.sflag [#allocation3], 1
    %10 = vsyncpa %s9, 0
    loop: start=0, step=1, limit=4
    $region2: #{tpu_custom_call.1} parent=1 // loop_pre_header
      _
    $region3: #{tpu_custom_call.1} parent=1 // loop_header
      %s12 = sphi 0, %s16
      %p13 = scmp.ge.s32.totalorder %s12, 4
      %s19 = sphi 0, %s31
      %s20 = sphi 0, %s27
      %s21 = sphi 0, %s19
      %s22 = sphi 0, %s20
      %s23 = sphi 0, %s21
      %s24 = sphi 0, %s22
      %s36 = sphi 0, %s38
      %s39 = sphi 0, %s36
      %s40 = sphi 0, %s39
      %s56 = sphi 0, %s40
      %s64 = sphi 0, %s66
      %s67 = sphi 0, %s64
      %s68 = sphi 0, %s67
      %s84 = sphi 0, %s68
      %s92 = sphi 0, %s94
      %s95 = sphi 0, %s92
      %s96 = sphi 0, %s95
      %s112 = sphi 0, %s96
      %s118 = sphi 0, %s120
      %s121 = sphi 0, %s118
      %s122 = sphi 0, %s121
      %s138 = sphi 0, %s122
    $region4: #{tpu_custom_call.1} parent=1 // loop_header_branch
      %15 = sbr.rel (%p13) target = $region8
    $region5: #{tpu_custom_call.1} parent=1 // loop_body
      %s17 = ssub.s32 %s12, 1
      %s18 = ssub.s32 %s12, 2
      %s25 = sadd.s32 1, %s20
      %p26 = scmp.ge.s32.totalorder %s25, 1
      %s27 = scalar_select %p26, 0, %s25
      %s28 = sadd.s32 1, %s19
      %s29 = scalar_select %p26, %s28, %s19
      %p30 = scmp.ge.s32.totalorder %s29, 2
      %s31 = scalar_select %p30, 0, %s29
      %s32 = sadd.s32 %s19, %s20
      %s33 = sadd.s32 %s31, %s27
      %s34 = ssub.s32 %s32, %s33
      %p35 = scmp.eq.s32.totalorder %s34, 0
      %s37 = sadd.s32 %s36, 1
      %s38 = scalar_select %p35, %s36, %s37
      %p41 = pneg %p35
      %p42 = scmp.eq.s32.totalorder %s12, 1
      %p43 = por %p41, %p42
      %p44 = scmp.ne.s32.totalorder %s36, %s39
      %p45 = scmp.eq.s32.totalorder %s12, 0
      %p46 = por %p44, %p45
      %p47 = scmp.ne.s32.totalorder %s36, %s39
      %p48 = scmp.eq.s32.totalorder %s17, 1
      %p49 = por %p47, %p48
      %p50 = scmp.ne.s32.totalorder %s39, %s40
      %p51 = scmp.eq.s32.totalorder %s17, 0
      %p52 = por %p50, %p51
      %p53 = scmp.ne.s32.totalorder %s39, %s40
      %p54 = scmp.eq.s32.totalorder %s18, 1
      %p55 = por %p53, %p54
      %p57 = scmp.ne.s32.totalorder %s40, %s56
      %p58 = scmp.eq.s32.totalorder %s18, 0
      %p59 = por %p57, %p58
      %s60 = sadd.s32 %s19, %s20
      %s61 = sadd.s32 %s31, %s27
      %s62 = ssub.s32 %s60, %s61
      %p63 = scmp.eq.s32.totalorder %s62, 0
      %s65 = sadd.s32 %s64, 1
      %s66 = scalar_select %p63, %s64, %s65
      %p69 = pneg %p63
      %p70 = scmp.eq.s32.totalorder %s12, 1
      %p71 = por %p69, %p70
      %p72 = scmp.ne.s32.totalorder %s64, %s67
      %p73 = scmp.eq.s32.totalorder %s12, 0
      %p74 = por %p72, %p73
      %p75 = scmp.ne.s32.totalorder %s64, %s67
      %p76 = scmp.eq.s32.totalorder %s17, 1
      %p77 = por %p75, %p76
      %p78 = scmp.ne.s32.totalorder %s67, %s68
      %p79 = scmp.eq.s32.totalorder %s17, 0
      %p80 = por %p78, %p79
      %p81 = scmp.ne.s32.totalorder %s67, %s68
      %p82 = scmp.eq.s32.totalorder %s18, 1
      %p83 = por %p81, %p82
      %p85 = scmp.ne.s32.totalorder %s68, %s84
      %p86 = scmp.eq.s32.totalorder %s18, 0
      %p87 = por %p85, %p86
      %s88 = sadd.s32 %s19, %s20
      %s89 = sadd.s32 %s31, %s27
      %s90 = ssub.s32 %s88, %s89
      %p91 = scmp.eq.s32.totalorder %s90, 0
      %s93 = sadd.s32 %s92, 1
      %s94 = scalar_select %p91, %s92, %s93
      %p97 = pneg %p91
      %p98 = scmp.eq.s32.totalorder %s12, 1
      %p99 = por %p97, %p98
      %p100 = scmp.ne.s32.totalorder %s92, %s95
      %p101 = scmp.eq.s32.totalorder %s12, 0
      %p102 = por %p100, %p101
      %p103 = scmp.ne.s32.totalorder %s92, %s95
      %p104 = scmp.eq.s32.totalorder %s17, 1
      %p105 = por %p103, %p104
      %p106 = scmp.ne.s32.totalorder %s95, %s96
      %p107 = scmp.eq.s32.totalorder %s17, 0
      %p108 = por %p106, %p107
      %p109 = scmp.ne.s32.totalorder %s95, %s96
      %p110 = scmp.eq.s32.totalorder %s18, 1
      %p111 = por %p109, %p110
      %p113 = scmp.ne.s32.totalorder %s96, %s112
      %p114 = scmp.eq.s32.totalorder %s18, 0
      %p115 = por %p113, %p114
      %s116 = ssub.s32 %s19, %s31
      %p117 = scmp.eq.s32.totalorder %s116, 0
      %s119 = sadd.s32 %s118, 1
      %s120 = scalar_select %p117, %s118, %s119
      %p123 = pneg %p117
      %p124 = scmp.eq.s32.totalorder %s12, 1
      %p125 = por %p123, %p124
      %p126 = scmp.ne.s32.totalorder %s118, %s121
      %p127 = scmp.eq.s32.totalorder %s12, 0
      %p128 = por %p126, %p127
      %p129 = scmp.ne.s32.totalorder %s118, %s121
      %p130 = scmp.eq.s32.totalorder %s17, 1
      %p131 = por %p129, %p130
      %p132 = scmp.ne.s32.totalorder %s121, %s122
      %p133 = scmp.eq.s32.totalorder %s17, 0
      %p134 = por %p132, %p133
      %p135 = scmp.ne.s32.totalorder %s121, %s122
      %p136 = scmp.eq.s32.totalorder %s18, 1
      %p137 = por %p135, %p136
      %p139 = scmp.ne.s32.totalorder %s122, %s138
      %p140 = scmp.eq.s32.totalorder %s18, 0
      %p141 = por %p139, %p140
      %p142 = scmp.le.s32.totalorder 1, %s12
      %p143 = scmp.lt.s32.totalorder %s12, 3
      %p144 = pnand %p142, %p143
      %p145 = pneg %p144
      // Predicated region
      $region9: #{tpu_custom_call.1} parent=5 // pred_check
        _
      $region10: #{tpu_custom_call.1} parent=5 // pred_check_branch
        %147 = sbr.rel (%p144) target = $region12
      $region11: #{tpu_custom_call.1} parent=5 // pred_region
        %s148 = ssub.s32 %s12, 1
      $region12: #{tpu_custom_call.1} parent=5 // pred_fallthru
        _
      %p149 = scmp.lt.s32.totalorder %s12, 2
      // Predicated region
      $region13: #{tpu_custom_call.1} parent=5 // pred_check
        %p150 = pneg %p149
      $region14: #{tpu_custom_call.1} parent=5 // pred_check_branch
        %152 = sbr.rel (%p150) target = $region16
      $region15: #{tpu_custom_call.1} parent=5 // pred_region
        // Predicated region
        $region17: #{tpu_custom_call.1} parent=15 // pred_check
          %p153 = pneg %p46
        $region18: #{tpu_custom_call.1} parent=15 // pred_check_branch
          %155 = sbr.rel (%p153) target = $region20
        $region19: #{tpu_custom_call.1} parent=15 // pred_region
          %s156 = sadd.s32 %s19, %s20
          %p157 = scmp.lt.s32.totalorder %s156, 1
          %s158 = scalar_select %p157, %s156, 1
          %s159 = smul.addr %s158, 8
          %s160 = scalar_lea.vmem %s0, %s159
          %s161 = sadd.s32 %s19, %s20
        $region20: #{tpu_custom_call.1} parent=15 // pred_fallthru
          _
        // Predicated region
        $region21: #{tpu_custom_call.1} parent=15 // pred_check
          %p162 = pneg %p74
        $region22: #{tpu_custom_call.1} parent=15 // pred_check_branch
          %164 = sbr.rel (%p162) target = $region24
        $region23: #{tpu_custom_call.1} parent=15 // pred_region
          %s165 = sadd.s32 %s19, %s20
          %p166 = scmp.lt.s32.totalorder %s165, 1
          %s167 = scalar_select %p166, %s165, 1
          %s168 = smul.addr %s167, 8
          %s169 = scalar_lea.vmem %s1, %s168
          %s170 = sadd.s32 %s19, %s20
        $region24: #{tpu_custom_call.1} parent=15 // pred_fallthru
          _
        // Predicated region
        $region25: #{tpu_custom_call.1} parent=15 // pred_check
          %p171 = pneg %p102
        $region26: #{tpu_custom_call.1} parent=15 // pred_check_branch
          %173 = sbr.rel (%p171) target = $region28
        $region27: #{tpu_custom_call.1} parent=15 // pred_region
          %s174 = sand.u32 %s92, 1
          %s175 = scalar_lea.sflag [#allocation3], %s174
          %s176 = sand.u32 %s92, 1
          %s177 = smul.addr %s176, 8
          %s178 = scalar_lea.vmem [#allocation2], %s177
          %s179 = sadd.s32 %s19, %s20
          %s181 = ssub.s32 128, 128
          %182 = vsyncadd %s175, %s181
          %s183 = smul.addr %s179, 128
          %s184 = scalar_lea.hbm %s2, %s183
          %s186 = sshll.u32 %s178, 4
          %s187 = int_to_ptr.vmem [resolvable:$true] %s186
          %189 = dma.hbm_to_vmem [thread:$0]  %s184, 128, %s187, %s175
        $region28: #{tpu_custom_call.1} parent=15 // pred_fallthru
          _
      $region16: #{tpu_custom_call.1} parent=5 // pred_fallthru
        _
      %p190 = scmp.le.s32.totalorder 1, %s12
      %p191 = scmp.lt.s32.totalorder %s12, 3
      %p192 = pnand %p190, %p191
      %p193 = pneg %p192
      // Predicated region
      $region29: #{tpu_custom_call.1} parent=5 // pred_check
        _
      $region30: #{tpu_custom_call.1} parent=5 // pred_check_branch
        %195 = sbr.rel (%p192) target = $region32
      $region31: #{tpu_custom_call.1} parent=5 // pred_region
        %s196 = ssub.s32 %s12, 1
        %s197 = sand.u32 %s95, 1
        %s198 = scalar_lea.sflag [#allocation3], %s197
        %s199 = sand.u32 %s95, 1
        %s200 = smul.addr %s199, 8
        %s201 = scalar_lea.vmem [#allocation2], %s200
        // Predicated region
        $region33: #{tpu_custom_call.1} parent=31 // pred_check
          %p202 = pneg %p108
        $region34: #{tpu_custom_call.1} parent=31 // pred_check_branch
          %204 = sbr.rel (%p202) target = $region36
        $region35: #{tpu_custom_call.1} parent=31 // pred_region
          %205 = dma.done %s198, 128
        $region36: #{tpu_custom_call.1} parent=31 // pred_fallthru
          _
        %s206 = sadd.s32 %s21, %s22
        %p207 = scmp.lt.s32.totalorder %s206, 1
        %s208 = scalar_select %p207, %s206, 1
        %s209 = smul.addr %s208, 8
        %s210 = scalar_lea.vmem %s0, %s209
        %p211 = pneg %p52
        %p212 = pneg %p49
        %s213 = sadd.s32 %s21, %s22
        %p214 = scmp.lt.s32.totalorder %s213, 1
        %s215 = scalar_select %p214, %s213, 1
        %s216 = smul.addr %s215, 8
        %s217 = scalar_lea.vmem %s1, %s216
        %p218 = pneg %p80
        %p219 = pneg %p77
        %s220 = sand.u32 %s95, 1
        %s221 = scalar_lea.sflag [#allocation3], %s220
        %s222 = sand.u32 %s95, 1
        %s223 = smul.addr %s222, 8
        %s224 = scalar_lea.vmem [#allocation2], %s223
        %p225 = pneg %p108
        %p226 = pneg %p105
        %p227 = pneg %p134
        %p228 = pneg %p131
        %p229 = scmp.lt.s32.totalorder %s21, 1
        %s230 = scalar_select %p229, %s21, 1
        %s231 = scalar_lea.vmem %s3, %s230
        %s232 = sadd.s32 %s21, %s22
        %p233 = scmp.lt.s32.totalorder %s232, 1
        %s234 = scalar_select %p233, %s232, 1
        %s235 = smul.addr %s234, 8
        %s236 = scalar_lea.vmem %s0, %s235
        %s237 = sadd.s32 %s21, %s22
        %s238 = sadd.s32 %s21, %s22
        %p239 = scmp.lt.s32.totalorder %s238, 1
        %s240 = scalar_select %p239, %s238, 1
        %s241 = smul.addr %s240, 8
        %s242 = scalar_lea.vmem %s1, %s241
        %s243 = sadd.s32 %s21, %s22
        %s244 = sadd.s32 %s21, %s22
        %p245 = scmp.lt.s32.totalorder %s21, 1
        %s246 = scalar_select %p245, %s21, 1
        %s247 = scalar_lea.vmem %s3, %s246
        %p248 = scmp.eq.s32.totalorder %s22, 0
        // Predicated region
        $region37: #{tpu_custom_call.1} parent=31 // pred_check
          %p249 = pneg %p248
        $region38: #{tpu_custom_call.1} parent=31 // pred_check_branch
          %251 = sbr.rel (%p249) target = $region40
        $region39: #{tpu_custom_call.1} parent=31 // pred_region
          %vm252 = vcmask 0
          %253 = vst.msk [vmem:[%s247] sm:$0x1] %vm252, 0.0
        $region40: #{tpu_custom_call.1} parent=31 // pred_fallthru
          _
        %v254 = vld [vmem:[%s242] sm:$0xff]
        %v255 = vld [vmem:[%s201] sm:$0xff]
        %v256 = vsub.f32 %v254, %v255
        %v257 = vmul.f32 %v256, %v256
        %258 = vadd.xlane.f32.xlu0 %v257
        %v259 = vpop.xlane.xlu0 %258
        %v260 = vrsqrt.pop %v259
        %v261 = vmul.f32 %v259, %v260
        %vm262 = vcmp.eq.f32.partialorder %v259, inf
        %v263 = vsel %vm262, %v259, %v261
        %vm264 = vcmp.eq.f32.partialorder %v259, 0.0
        %v265 = vand.u32 %v259, 2147483648
        %v266 = vsel %vm264, %v265, %v263
        %v267 = vld [vmem:[%s236] sm:$0xff]
        %v268 = vsub.f32 1.0, %v266
        %v269 = vmax.f32 %v268, 0.0
        %v270 = vmul.f32 %v267, %v259
        %v271 = vsub.f32 1.0, %v267
        %v272 = vmul.f32 %v269, %v269
        %v273 = vmul.f32 %v271, %v272
        %v274 = vadd.f32 %v270, %v273
        %v275 = vld [vmem:[%s247] sm:$0x1]
        %vm276 = vcmask 7168
        %v277 = vsel %vm276, %v274, 0.0
        %278 = vadd.xlane.f32.xlu0 %v277
        %v279 = vpop.xlane.xlu0 %278
        %v280 = vrot.slane %v279, 4
        %v281 = vadd.f32 %v279, %v280
        %v282 = vrot.slane %v281, 2
        %v283 = vadd.f32 %v281, %v282
        %v284 = vrot.slane %v283, 1
        %v285 = vadd.f32 %v283, %v284
        %s286 = vtos %v285
        %s287 = smul.f32 %s286, 0.0625
        %v288 = vstv %s287
        %v289 = vadd.f32 %v275, %v288
        %vm290 = vcmask 0
        %291 = vst.msk [vmem:[%s247] sm:$0x1] %vm290, %v289
        %p292 = scmp.lt.s32.totalorder %s21, 1
        %s293 = scalar_select %p292, %s21, 1
        %s294 = scalar_lea.vmem %s3, %s293
        // Predicated region
        $region41: #{tpu_custom_call.1} parent=31 // pred_check
          %p295 = pneg %p131
        $region42: #{tpu_custom_call.1} parent=31 // pred_check_branch
          %297 = sbr.rel (%p295) target = $region44
        $region43: #{tpu_custom_call.1} parent=31 // pred_region
          _
        $region44: #{tpu_custom_call.1} parent=31 // pred_fallthru
          _
      $region32: #{tpu_custom_call.1} parent=5 // pred_fallthru
        _
      %p298 = scmp.le.s32.totalorder 2, %s12
      // Predicated region
      $region45: #{tpu_custom_call.1} parent=5 // pred_check
        %p299 = pneg %p298
      $region46: #{tpu_custom_call.1} parent=5 // pred_check_branch
        %301 = sbr.rel (%p299) target = $region48
      $region47: #{tpu_custom_call.1} parent=5 // pred_region
        %s302 = ssub.s32 %s12, 2
        // Predicated region
        $region49: #{tpu_custom_call.1} parent=47 // pred_check
          %p303 = pneg %p137
        $region50: #{tpu_custom_call.1} parent=47 // pred_check_branch
          %305 = sbr.rel (%p303) target = $region52
        $region51: #{tpu_custom_call.1} parent=47 // pred_region
          %p306 = scmp.lt.s32.totalorder %s23, 1
          %s307 = scalar_select %p306, %s23, 1
          %s308 = scalar_lea.vmem %s3, %s307
        $region52: #{tpu_custom_call.1} parent=47 // pred_fallthru
          _
      $region48: #{tpu_custom_call.1} parent=5 // pred_fallthru
        _
    $region6: #{tpu_custom_call.1} parent=1 // loop_footer
      %s16 = sadd.s32 1, %s12
    $region7: #{tpu_custom_call.1} parent=1 // loop_footer_branch
      %11 = sbr.rel target = $region3
    $region8: #{tpu_custom_call.1} parent=1 // loop_exit
      _
    %309 = vsyncpa [#allocation3], 1
    %s310 = scalar_lea.sflag [#allocation3], 1
    %311 = vsyncpa %s310, 1

</llo_original>
